<compile_context>
chip_gen: v6e
topology: v6e:2x2x1
jax: 0.10.0
libtpu: 0.0.40
codegen_flags: <defaults>
</compile_context>

<pallas_src>
import jax
import jax.numpy as jnp
from jax.experimental import pallas as pl
from jax.experimental.pallas import tpu as pltpu

CAM_VIEWS = ("Dashboard", "Right_side_window", "Rear_view")
_CAM_TO_IDX = {name: i for i, name in enumerate(CAM_VIEWS)}


def _boundary_patch_kernel(cam_ref, x_ref, sp_ref, ep_ref, o_ref):
    # cam_ref : SMEM (B,) int32 scalar prefetch (consumed by the index_maps).
    # x_ref   : raw HBM ref of the aliased input clip batch -- never touched.
    # sp_ref  : VMEM (C, H*W) start patch for this clip's camera view.
    # ep_ref  : VMEM (C, H*W) end patch for this clip's camera view.
    # o_ref   : VMEM (C, H*W) output slab = frame 0 (j == 0) or frame T-1 (j == 1).
    del cam_ref, x_ref
    j = pl.program_id(1)

    @pl.when(j == 0)
    def _():
        o_ref[...] = sp_ref[...].astype(o_ref.dtype)

    @pl.when(j == 1)
    def _():
        o_ref[...] = ep_ref[...].astype(o_ref.dtype)


def multi_cam_boundary_patch(x, cam_views, start_patches, end_patches):
    """Pallas implementation of MultiCamBoundaryPatch.forward.

    x:             (B, C, T, H, W) float array
    cam_views:     list of B camera-view name strings
    start_patches: (num_views, C, H, W) stacked start patches (order = CAM_VIEWS)
    end_patches:   (num_views, C, H, W) stacked end patches
    returns:       [prompted_x] with prompted_x of shape (B, C, T, H, W)
    """
    B, C, T, H, W = x.shape
    assert B == len(cam_views), (
        f"len of cam_views does not match batch size of x; "
        f"expected {B}, got {len(cam_views)} instead")
    V = start_patches.shape[0]
    HW = H * W
    # Lane-dense requirement for the boundary-frame blocks.
    # TODO(synk): support H*W not a multiple of 128 (pad the lane dim); all
    # module-relevant crop sizes (16, 224, ...) satisfy this.
    assert HW % 128 == 0, f"H*W must be a multiple of 128, got {HW}"

    cam_idx = jnp.asarray([_CAM_TO_IDX[v] for v in cam_views], dtype=jnp.int32)

    # Contiguous (free) reshapes -- no transpose, no extra HBM traffic.
    x2 = x.reshape(B, C, T * HW)
    sp2 = start_patches.reshape(V, C, HW)
    ep2 = end_patches.reshape(V, C, HW)

    n_j = 1 if T == 1 else 2  # T == 1: only the start patch (torch branch order)
    patch_map = lambda b, j, cam: (cam[b], 0, 0)
    out_map = lambda b, j, cam: (b, 0, j * (T - 1))

    grid_spec = pltpu.PrefetchScalarGridSpec(
        num_scalar_prefetch=1,
        grid=(B, n_j),
        in_specs=[
            pl.BlockSpec(memory_space=pl.ANY),        # x (aliased to the output)
            pl.BlockSpec((None, C, HW), patch_map),   # start patch of this view
            pl.BlockSpec((None, C, HW), patch_map),   # end patch of this view
        ],
        out_specs=pl.BlockSpec((None, C, HW), out_map),
    )

    out2 = pl.pallas_call(
        _boundary_patch_kernel,
        out_shape=jax.ShapeDtypeStruct((B, C, T * HW), x.dtype),
        grid_spec=grid_spec,
        # Alias x -> output: interior frames are carried through without the
        # kernel moving them (zero bulk traffic if the caller donates x).
        input_output_aliases={1: 0},
        compiler_params=pltpu.CompilerParams(
            dimension_semantics=("parallel", "parallel")),
    )(cam_idx, x2, sp2, ep2)

    return [out2.reshape(B, C, T, H, W)]


def _reference(x, cam_views, start_patches, end_patches):
    cam_idx = jnp.asarray([_CAM_TO_IDX[v] for v in cam_views], dtype=jnp.int32)
    out = x.at[:, :, 0].set(start_patches[cam_idx].astype(x.dtype))
    if x.shape[2] > 1:
        out = out.at[:, :, -1].set(end_patches[cam_idx].astype(x.dtype))
    return out


if __name__ == "__main__":
    # Small shapes consistent with the module: B=2 clips, C=3 channels,
    # T=8 frames, image_size=16.
    B, C, T, H, W = 2, 3, 8, 16, 16
    key = jax.random.PRNGKey(0)
    kx, ksp, kep = jax.random.split(key, 3)

    x = jax.random.normal(kx, (B, C, T, H, W), dtype=jnp.float32)
    # Stand-ins for nn.Parameter(torch.randn([1,3,S,S])) stacked over CAM_VIEWS.
    start_patches = jax.random.normal(ksp, (len(CAM_VIEWS), C, H, W),
                                      dtype=jnp.float32)
    end_patches = jax.random.normal(kep, (len(CAM_VIEWS), C, H, W),
                                    dtype=jnp.float32)
    cam_views = ["Dashboard", "Rear_view"]

    out = multi_cam_boundary_patch(x, cam_views, start_patches, end_patches)[0]
    jax.block_until_ready(out)

    ref = _reference(x, cam_views, start_patches, end_patches)
    assert out.shape == (B, C, T, H, W)
    assert jnp.allclose(out, ref), "Pallas output mismatch vs reference (T=8)"

    # T == 1 edge case: only the start patch is applied (torch branch order).
    x1 = jax.random.normal(kx, (B, C, 1, H, W), dtype=jnp.float32)
    out1 = multi_cam_boundary_patch(x1, cam_views, start_patches, end_patches)[0]
    jax.block_until_ready(out1)
    ref1 = _reference(x1, cam_views, start_patches, end_patches)
    assert jnp.allclose(out1, ref1), "Pallas output mismatch vs reference (T=1)"

    print("KERNEL_OK")
</pallas_src>

<mosaic_0001>
module attributes {stable_mosaic.version = 11 : i64} {
  func.func @_boundary_patch_kernel(%arg0: i32, %arg1: i32, %arg2: memref<2xi32, #tpu.memory_space<smem>>, %arg3: memref<2x3x2048xf32, #tpu.memory_space<any>>, %arg4: memref<1x3x256xf32, #tpu.memory_space<vmem>>, %arg5: memref<1x3x256xf32, #tpu.memory_space<vmem>>, %arg6: memref<1x3x256xf32, #tpu.memory_space<vmem>>) attributes {dimension_semantics = [#tpu.dimension_semantics<parallel>, #tpu.dimension_semantics<parallel>], iteration_bounds = array<i64: 2, 2>, scalar_prefetch = 1 : i64, scratch_operands = 0 : i64, tpu.core_type = #tpu.core_type<tc>, window_params = [{}, {transform_indices = @transform_1, window_bounds = array<i64: 1, 3, 256>}, {transform_indices = @transform_2, window_bounds = array<i64: 1, 3, 256>}, {transform_indices = @transform_3, window_bounds = array<i64: 1, 3, 256>}]} {
    %c0_i32 = arith.constant 0 : i32
    %0 = arith.cmpi eq, %arg1, %c0_i32 : i32
    %1 = arith.extui %0 : i1 to i32
    %c0_i32_0 = arith.constant 0 : i32
    %2 = arith.cmpi ne, %1, %c0_i32_0 : i32
    scf.if %2 {
      %c0 = arith.constant 0 : index
      %c0_2 = arith.constant 0 : index
      %c0_3 = arith.constant 0 : index
      %6 = vector.load %arg4[%c0, %c0_2, %c0_3] : memref<1x3x256xf32, #tpu.memory_space<vmem>>, vector<1x3x256xf32>
      %7 = vector.shape_cast %6 : vector<1x3x256xf32> to vector<3x256xf32>
      %c0_4 = arith.constant 0 : index
      %c0_5 = arith.constant 0 : index
      %c0_6 = arith.constant 0 : index
      %8 = vector.load %arg6[%c0_4, %c0_5, %c0_6] : memref<1x3x256xf32, #tpu.memory_space<vmem>>, vector<1x3x256xf32>
      %9 = vector.shape_cast %8 : vector<1x3x256xf32> to vector<3x256xf32>
      %10 = vector.shape_cast %7 : vector<3x256xf32> to vector<1x3x256xf32>
      tpu.vector_store %arg6[%c0_4, %c0_5, %c0_6], %10 {strides = array<i32>} : memref<1x3x256xf32, #tpu.memory_space<vmem>>, vector<1x3x256xf32>,
    } else {
    }
    %c1_i32 = arith.constant 1 : i32
    %3 = arith.cmpi eq, %arg1, %c1_i32 : i32
    %4 = arith.extui %3 : i1 to i32
    %c0_i32_1 = arith.constant 0 : i32
    %5 = arith.cmpi ne, %4, %c0_i32_1 : i32
    scf.if %5 {
      %c0 = arith.constant 0 : index
      %c0_2 = arith.constant 0 : index
      %c0_3 = arith.constant 0 : index
      %6 = vector.load %arg5[%c0, %c0_2, %c0_3] : memref<1x3x256xf32, #tpu.memory_space<vmem>>, vector<1x3x256xf32>
      %7 = vector.shape_cast %6 : vector<1x3x256xf32> to vector<3x256xf32>
      %c0_4 = arith.constant 0 : index
      %c0_5 = arith.constant 0 : index
      %c0_6 = arith.constant 0 : index
      %8 = vector.load %arg6[%c0_4, %c0_5, %c0_6] : memref<1x3x256xf32, #tpu.memory_space<vmem>>, vector<1x3x256xf32>
      %9 = vector.shape_cast %8 : vector<1x3x256xf32> to vector<3x256xf32>
      %10 = vector.shape_cast %7 : vector<3x256xf32> to vector<1x3x256xf32>
      tpu.vector_store %arg6[%c0_4, %c0_5, %c0_6], %10 {strides = array<i32>} : memref<1x3x256xf32, #tpu.memory_space<vmem>>, vector<1x3x256xf32>,
    } else {
    }
    return
  }
  func.func @transform_1(%arg0: i32, %arg1: i32, %arg2: memref<2xi32, #tpu.memory_space<smem>>) -> (i32, i32, i32) {
    %0 = arith.index_cast %arg0 : i32 to index
    %1 = memref.load %arg2[%0] : memref<2xi32, #tpu.memory_space<smem>>
    %c0_i32 = arith.constant 0 : i32
    %c0_i32_0 = arith.constant 0 : i32
    %c0_i32_1 = arith.constant 0 : i32
    return %1, %c0_i32, %c0_i32_0 : i32, i32, i32
  }
  func.func @transform_2(%arg0: i32, %arg1: i32, %arg2: memref<2xi32, #tpu.memory_space<smem>>) -> (i32, i32, i32) {
    %0 = arith.index_cast %arg0 : i32 to index
    %1 = memref.load %arg2[%0] : memref<2xi32, #tpu.memory_space<smem>>
    %c0_i32 = arith.constant 0 : i32
    %c0_i32_0 = arith.constant 0 : i32
    %c0_i32_1 = arith.constant 0 : i32
    return %1, %c0_i32, %c0_i32_0 : i32, i32, i32
  }
  func.func @transform_3(%arg0: i32, %arg1: i32, %arg2: memref<2xi32, #tpu.memory_space<smem>>) -> (i32, i32, i32) {
    %c7_i32 = arith.constant 7 : i32
    %0 = arith.muli %arg1, %c7_i32 : i32
    %c0_i32 = arith.constant 0 : i32
    %c0_i32_0 = arith.constant 0 : i32
    return %arg0, %c0_i32, %0 : i32, i32, i32
  }
}

</mosaic_0001>

<llo_original>
// kernel: tpu_custom_call.1
$region0: #{tpu_custom_call.1}
  #allocation0 [shape = 'u32[]', space=smem, size = 0x4, offset = 0x4, fixed_abs, tag = 'smem constant byte address 0x4 - core index']
  #allocation1 [shape = 'u32[144,128]{1,0:T(1,128)}', space=vmem, size = 0x12000, scoped, tag = 'internal scratch']
  #allocation2 [shape = 's32[1]{0}', space=sflag, size = 0x4, scoped, tag = 'scoped memory for tpu_custom_call.1']
  #allocation3 [shape = 'u8[512]{0}', space=smem, size = 0x200, scoped, tag = 'prefetched SMEM operand 0']
  %s0 = inlined_call_operand.vmem [shape: s32[2], index: 0, kind: input, shape index: {}]
  %s1 = inlined_call_operand.vmem [shape: f32[2,3,2048], index: 1, kind: input, shape index: {}, may-alias: {1,4}]
  %s2 = inlined_call_operand.vmem [shape: f32[3,3,256], index: 2, kind: input, shape index: {}]
  %s3 = inlined_call_operand.vmem [shape: f32[3,3,256], index: 3, kind: input, shape index: {}]
  %s4 = inlined_call_operand.vmem [shape: f32[2,3,2048], index: 4, kind: output, shape index: {}, may-alias: {1,4}]
  %s5 = sld [smem:[#allocation0]]
  $region49: #{tpu_custom_call.1} parent=0
    _
  %s7 = ssub.s32 1, %s5
  %s8 = scalar_select 0, %s7, %s5
  %s9 = sshll.u32 %s0, 4
  %s10 = int_to_ptr.vmem [resolvable:$true] %s9
  %12 = dma.vmem_to_smem %s10, 16, [#allocation3], [#allocation2]
  %13 = dma.done [#allocation2], 16
  %14 = sfence
  loop: start=0, step=1, limit=6
  $region2: #{tpu_custom_call.1} parent=0 // loop_pre_header
    _
  $region3: #{tpu_custom_call.1} parent=0 // loop_header
    %s16 = sphi 0, %s20
    %p17 = scmp.ge.s32.totalorder %s16, 6
    %s23 = sphi 0, %s35
    %s24 = sphi 0, %s31
    %s25 = sphi 0, %s23
    %s26 = sphi 0, %s24
    %s27 = sphi 0, %s25
    %s28 = sphi 0, %s26
    %s40 = sphi 0, %s42
    %s43 = sphi 0, %s40
    %s44 = sphi 0, %s43
    %s60 = sphi 0, %s44
    %s68 = sphi 0, %s70
    %s71 = sphi 0, %s68
    %s72 = sphi 0, %s71
    %s88 = sphi 0, %s72
    %s98 = sphi 0, %s100
    %s101 = sphi 0, %s98
    %s102 = sphi 0, %s101
    %s118 = sphi 0, %s102
  $region4: #{tpu_custom_call.1} parent=0 // loop_header_branch
    %19 = sbr.rel (%p17) target = $region8
  $region5: #{tpu_custom_call.1} parent=0 // loop_body
    %s21 = ssub.s32 %s16, 1
    %s22 = ssub.s32 %s16, 2
    %s29 = sadd.s32 1, %s24
    %p30 = scmp.ge.s32.totalorder %s29, 2
    %s31 = scalar_select %p30, 0, %s29
    %s32 = sadd.s32 1, %s23
    %s33 = scalar_select %p30, %s32, %s23
    %p34 = scmp.ge.s32.totalorder %s33, 2
    %s35 = scalar_select %p34, 0, %s33
    %s36 = sld [smem:[#allocation3 + %s23]]
    %s37 = sld [smem:[#allocation3 + %s35]]
    %s38 = ssub.s32 %s36, %s37
    %p39 = scmp.eq.s32.totalorder %s38, 0
    %s41 = sadd.s32 %s40, 1
    %s42 = scalar_select %p39, %s40, %s41
    %p45 = pneg %p39
    %p46 = scmp.eq.s32.totalorder %s16, 3
    %p47 = por %p45, %p46
    %p48 = scmp.ne.s32.totalorder %s40, %s43
    %p49 = scmp.eq.s32.totalorder %s16, 0
    %p50 = por %p48, %p49
    %p51 = scmp.ne.s32.totalorder %s40, %s43
    %p52 = scmp.eq.s32.totalorder %s21, 3
    %p53 = por %p51, %p52
    %p54 = scmp.ne.s32.totalorder %s43, %s44
    %p55 = scmp.eq.s32.totalorder %s21, 0
    %p56 = por %p54, %p55
    %p57 = scmp.ne.s32.totalorder %s43, %s44
    %p58 = scmp.eq.s32.totalorder %s22, 3
    %p59 = por %p57, %p58
    %p61 = scmp.ne.s32.totalorder %s44, %s60
    %p62 = scmp.eq.s32.totalorder %s22, 0
    %p63 = por %p61, %p62
    %s64 = sld [smem:[#allocation3 + %s23]]
    %s65 = sld [smem:[#allocation3 + %s35]]
    %s66 = ssub.s32 %s64, %s65
    %p67 = scmp.eq.s32.totalorder %s66, 0
    %s69 = sadd.s32 %s68, 1
    %s70 = scalar_select %p67, %s68, %s69
    %p73 = pneg %p67
    %p74 = scmp.eq.s32.totalorder %s16, 3
    %p75 = por %p73, %p74
    %p76 = scmp.ne.s32.totalorder %s68, %s71
    %p77 = scmp.eq.s32.totalorder %s16, 0
    %p78 = por %p76, %p77
    %p79 = scmp.ne.s32.totalorder %s68, %s71
    %p80 = scmp.eq.s32.totalorder %s21, 3
    %p81 = por %p79, %p80
    %p82 = scmp.ne.s32.totalorder %s71, %s72
    %p83 = scmp.eq.s32.totalorder %s21, 0
    %p84 = por %p82, %p83
    %p85 = scmp.ne.s32.totalorder %s71, %s72
    %p86 = scmp.eq.s32.totalorder %s22, 3
    %p87 = por %p85, %p86
    %p89 = scmp.ne.s32.totalorder %s72, %s88
    %p90 = scmp.eq.s32.totalorder %s22, 0
    %p91 = por %p89, %p90
    %s92 = smul.u32 %s24, 7
    %s93 = smul.u32 %s31, 7
    %s94 = ssub.s32 %s23, %s35
    %s95 = ssub.s32 %s92, %s93
    %s96 = sor.u32 %s94, %s95
    %p97 = scmp.eq.s32.totalorder %s96, 0
    %s99 = sadd.s32 %s98, 1
    %s100 = scalar_select %p97, %s98, %s99
    %p103 = pneg %p97
    %p104 = scmp.eq.s32.totalorder %s16, 3
    %p105 = por %p103, %p104
    %p106 = scmp.ne.s32.totalorder %s98, %s101
    %p107 = scmp.eq.s32.totalorder %s16, 0
    %p108 = por %p106, %p107
    %p109 = scmp.ne.s32.totalorder %s98, %s101
    %p110 = scmp.eq.s32.totalorder %s21, 3
    %p111 = por %p109, %p110
    %p112 = scmp.ne.s32.totalorder %s101, %s102
    %p113 = scmp.eq.s32.totalorder %s21, 0
    %p114 = por %p112, %p113
    %p115 = scmp.ne.s32.totalorder %s101, %s102
    %p116 = scmp.eq.s32.totalorder %s22, 3
    %p117 = por %p115, %p116
    %p119 = scmp.ne.s32.totalorder %s102, %s118
    %p120 = scmp.eq.s32.totalorder %s22, 0
    %p121 = por %p119, %p120
    %p122 = scmp.le.s32.totalorder 1, %s16
    %p123 = scmp.lt.s32.totalorder %s16, 5
    %p124 = pnand %p122, %p123
    %p125 = pneg %p124
    // Predicated region
    $region9: #{tpu_custom_call.1} parent=5 // pred_check
      _
    $region10: #{tpu_custom_call.1} parent=5 // pred_check_branch
      %127 = sbr.rel (%p124) target = $region12
    $region11: #{tpu_custom_call.1} parent=5 // pred_region
      %s128 = ssub.s32 %s16, 1
    $region12: #{tpu_custom_call.1} parent=5 // pred_fallthru
      _
    %p129 = scmp.lt.s32.totalorder %s16, 4
    // Predicated region
    $region13: #{tpu_custom_call.1} parent=5 // pred_check
      %p130 = pneg %p129
    $region14: #{tpu_custom_call.1} parent=5 // pred_check_branch
      %132 = sbr.rel (%p130) target = $region16
    $region15: #{tpu_custom_call.1} parent=5 // pred_region
      // Predicated region
      $region17: #{tpu_custom_call.1} parent=15 // pred_check
        %p133 = pneg %p50
      $region18: #{tpu_custom_call.1} parent=15 // pred_check_branch
        %135 = sbr.rel (%p133) target = $region20
      $region19: #{tpu_custom_call.1} parent=15 // pred_region
        %s136 = sld [smem:[#allocation3 + %s23]]
        %p137 = scmp.lt.s32.totalorder %s136, 2
        %s138 = scalar_select %p137, %s136, 2
        %s139 = smul.addr %s138, 2
        %s140 = smul.addr %s139, 4
        %s141 = scalar_lea.vmem %s2, %s140
        %s142 = sld [smem:[#allocation3 + %s23]]
      $region20: #{tpu_custom_call.1} parent=15 // pred_fallthru
        _
      // Predicated region
      $region21: #{tpu_custom_call.1} parent=15 // pred_check
        %p143 = pneg %p78
      $region22: #{tpu_custom_call.1} parent=15 // pred_check_branch
        %145 = sbr.rel (%p143) target = $region24
      $region23: #{tpu_custom_call.1} parent=15 // pred_region
        %s146 = sld [smem:[#allocation3 + %s23]]
        %p147 = scmp.lt.s32.totalorder %s146, 2
        %s148 = scalar_select %p147, %s146, 2
        %s149 = smul.addr %s148, 2
        %s150 = smul.addr %s149, 4
        %s151 = scalar_lea.vmem %s3, %s150
        %s152 = sld [smem:[#allocation3 + %s23]]
      $region24: #{tpu_custom_call.1} parent=15 // pred_fallthru
        _
    $region16: #{tpu_custom_call.1} parent=5 // pred_fallthru
      _
    %p153 = scmp.le.s32.totalorder 1, %s16
    %p154 = scmp.lt.s32.totalorder %s16, 5
    %p155 = pnand %p153, %p154
    %p156 = pneg %p155
    // Predicated region
    $region25: #{tpu_custom_call.1} parent=5 // pred_check
      _
    $region26: #{tpu_custom_call.1} parent=5 // pred_check_branch
      %158 = sbr.rel (%p155) target = $region28
    $region27: #{tpu_custom_call.1} parent=5 // pred_region
      %s159 = ssub.s32 %s16, 1
      %s160 = sld [smem:[#allocation3 + %s25]]
      %p161 = scmp.lt.s32.totalorder %s160, 2
      %s162 = scalar_select %p161, %s160, 2
      %s163 = smul.addr %s162, 2
      %s164 = smul.addr %s163, 4
      %s165 = scalar_lea.vmem %s2, %s164
      %p166 = pneg %p56
      %p167 = pneg %p53
      %s168 = sld [smem:[#allocation3 + %s25]]
      %p169 = scmp.lt.s32.totalorder %s168, 2
      %s170 = scalar_select %p169, %s168, 2
      %s171 = smul.addr %s170, 2
      %s172 = smul.addr %s171, 4
      %s173 = scalar_lea.vmem %s3, %s172
      %p174 = pneg %p84
      %p175 = pneg %p81
      %p176 = pneg %p114
      %p177 = pneg %p111
      %s178 = smul.u32 %s26, 7
      %s179 = smul.u32 2, %s178
      %p180 = scmp.lt.s32.totalorder %s25, 1
      %s181 = scalar_select %p180, %s25, 1
      %p182 = scmp.lt.s32.totalorder %s179, 15
      %s183 = scalar_select %p182, %s179, 15
      %s184 = smul.addr %s181, 16
      %s185 = sadd.s32 %s183, %s184
      %s186 = smul.addr %s185, 4
      %s187 = scalar_lea.vmem %s4, %s186
      %s188 = sld [smem:[#allocation3 + %s25]]
      %p189 = scmp.lt.s32.totalorder %s188, 2
      %s190 = scalar_select %p189, %s188, 2
      %s191 = smul.addr %s190, 2
      %s192 = smul.addr %s191, 4
      %s193 = scalar_lea.vmem %s2, %s192
      %s194 = sld [smem:[#allocation3 + %s25]]
      %s195 = sld [smem:[#allocation3 + %s25]]
      %p196 = scmp.lt.s32.totalorder %s195, 2
      %s197 = scalar_select %p196, %s195, 2
      %s198 = smul.addr %s197, 2
      %s199 = smul.addr %s198, 4
      %s200 = scalar_lea.vmem %s3, %s199
      %s201 = sld [smem:[#allocation3 + %s25]]
      %s202 = smul.u32 %s26, 7
      %s203 = smul.u32 2, %s202
      %p204 = scmp.lt.s32.totalorder %s25, 1
      %s205 = scalar_select %p204, %s25, 1
      %p206 = scmp.lt.s32.totalorder %s203, 15
      %s207 = scalar_select %p206, %s203, 15
      %s208 = smul.addr %s205, 16
      %s209 = sadd.s32 %s207, %s208
      %s210 = smul.addr %s209, 4
      %s211 = scalar_lea.vmem %s4, %s210
      %s212 = smul.u32 %s26, 7
      %s213 = smul.u32 2, %s212
      %p214 = scmp.eq.s32.totalorder %s26, 0
      // Predicated region
      $region29: #{tpu_custom_call.1} parent=27 // pred_check
        %p215 = pneg %p214
      $region30: #{tpu_custom_call.1} parent=27 // pred_check_branch
        %217 = sbr.rel (%p215) target = $region32
      $region31: #{tpu_custom_call.1} parent=27 // pred_region
        %v218 = vld [vmem:[%s193] sm:$0x77]
        %219 = vst [vmem:[%s211] sm:$0x77] %v218
      $region32: #{tpu_custom_call.1} parent=27 // pred_fallthru
        _
      %p220 = scmp.eq.s32.totalorder %s26, 1
      // Predicated region
      $region33: #{tpu_custom_call.1} parent=27 // pred_check
        %p221 = pneg %p220
      $region34: #{tpu_custom_call.1} parent=27 // pred_check_branch
        %223 = sbr.rel (%p221) target = $region36
      $region35: #{tpu_custom_call.1} parent=27 // pred_region
        %v224 = vld [vmem:[%s200] sm:$0x77]
        %225 = vst [vmem:[%s211] sm:$0x77] %v224
      $region36: #{tpu_custom_call.1} parent=27 // pred_fallthru
        _
      %s226 = smul.u32 %s26, 7
      %s227 = smul.u32 2, %s226
      %p228 = scmp.lt.s32.totalorder %s25, 1
      %s229 = scalar_select %p228, %s25, 1
      %p230 = scmp.lt.s32.totalorder %s227, 15
      %s231 = scalar_select %p230, %s227, 15
      %s232 = smul.addr %s229, 16
      %s233 = sadd.s32 %s231, %s232
      %s234 = smul.addr %s233, 4
      %s235 = scalar_lea.vmem %s4, %s234
      // Predicated region
      $region37: #{tpu_custom_call.1} parent=27 // pred_check
        %p236 = pneg %p111
      $region38: #{tpu_custom_call.1} parent=27 // pred_check_branch
        %238 = sbr.rel (%p236) target = $region40
      $region39: #{tpu_custom_call.1} parent=27 // pred_region
        %s239 = smul.u32 %s26, 7
        %s240 = smul.u32 2, %s239
      $region40: #{tpu_custom_call.1} parent=27 // pred_fallthru
        _
    $region28: #{tpu_custom_call.1} parent=5 // pred_fallthru
      _
    %p241 = scmp.le.s32.totalorder 2, %s16
    // Predicated region
    $region41: #{tpu_custom_call.1} parent=5 // pred_check
      %p242 = pneg %p241
    $region42: #{tpu_custom_call.1} parent=5 // pred_check_branch
      %244 = sbr.rel (%p242) target = $region44
    $region43: #{tpu_custom_call.1} parent=5 // pred_region
      %s245 = ssub.s32 %s16, 2
      // Predicated region
      $region45: #{tpu_custom_call.1} parent=43 // pred_check
        %p246 = pneg %p117
      $region46: #{tpu_custom_call.1} parent=43 // pred_check_branch
        %248 = sbr.rel (%p246) target = $region48
      $region47: #{tpu_custom_call.1} parent=43 // pred_region
        %s249 = smul.u32 %s28, 7
        %s250 = smul.u32 2, %s249
        %p251 = scmp.lt.s32.totalorder %s27, 1
        %s252 = scalar_select %p251, %s27, 1
        %p253 = scmp.lt.s32.totalorder %s250, 15
        %s254 = scalar_select %p253, %s250, 15
        %s255 = smul.addr %s252, 16
        %s256 = sadd.s32 %s254, %s255
        %s257 = smul.addr %s256, 4
        %s258 = scalar_lea.vmem %s4, %s257
      $region48: #{tpu_custom_call.1} parent=43 // pred_fallthru
        _
    $region44: #{tpu_custom_call.1} parent=5 // pred_fallthru
      _
  $region6: #{tpu_custom_call.1} parent=0 // loop_footer
    %s20 = sadd.s32 1, %s16
  $region7: #{tpu_custom_call.1} parent=0 // loop_footer_branch
    %15 = sbr.rel target = $region3
  $region8: #{tpu_custom_call.1} parent=0 // loop_exit
    _

</llo_original>
